<compile_context>
chip_gen: v6e
topology: v6e:2x2x1
jax: 0.10.0
libtpu: 0.0.40
codegen_flags: <defaults>
</compile_context>

<pallas_src>
import numpy as np
import jax
import jax.numpy as jnp
from jax import lax
from jax.experimental import pallas as pl
from jax.experimental.pallas import tpu as pltpu


def _cdiv(a, b):
    return -(-a // b)


def _round_up(a, b):
    return _cdiv(a, b) * b


def _make_upsample_kernel(*, E, HL, HR, TQ, T, C_in, C_out, s,
                          mxu_dtype, need_tail_mask):
    """Kernel factory; all shape parameters are static Python ints."""

    def kernel(x_ref, halo_ref, wf_ref, b_ref, a_ref, o_ref, win_ref):
        # x_ref    : (C_in, TQ)          current input tile (time on lanes)
        # halo_ref : (C_in, max(H,1))    [left HL | right HR] halo, OOB pre-zeroed
        # wf_ref   : (s*C_out, E*C_in)   folded weights (all phases+taps), MXU dtype
        # b_ref    : (s*C_out, 1)        bias tiled per phase, f32
        # a_ref    : (1,) in SMEM        PReLU alpha
        # o_ref    : (s*C_out, TQ)       phase-stacked output tile (lane-dense)
        # win_ref  : (C_in, Wpad) VMEM   staged input-window scratch
        x = x_ref[...]
        if need_tail_mask:
            # Only the last time tile can contain columns >= T (Pallas pads the
            # partial block with unspecified data).  Statically skipped when
            # T % TQ == 0; otherwise a handful of VPU ops per tile.
            t = pl.program_id(1)
            col = lax.broadcasted_iota(jnp.int32, (C_in, TQ), 1) + t * TQ
            x = jnp.where(col < T, x, jnp.zeros_like(x))

        # Stage the window [left halo | x | right halo] once in VMEM scratch.
        if HL > 0:
            win_ref[:, 0:HL] = halo_ref[:, 0:HL]
        win_ref[:, HL:HL + TQ] = x
        if HR > 0:
            win_ref[:, HL + TQ:HL + TQ + HR] = halo_ref[:, HL:HL + HR]

        # im2col over the E distinct shifts: static-offset loads from scratch.
        taps = [win_ref[:, e:e + TQ] for e in range(E)]
        xs = taps[0] if E == 1 else jnp.concatenate(taps, axis=0)  # (E*C_in, TQ)

        # Single fused MXU matmul for all phases; f32 accumulation.
        y = jnp.dot(wf_ref[...], xs.astype(mxu_dtype),
                    preferred_element_type=jnp.float32)            # (s*C_out, TQ)
        y = y + b_ref[...]
        alpha = a_ref[0]
        y = jnp.where(y > 0, y, alpha * y)                          # PReLU (f32)
        o_ref[...] = y.astype(o_ref.dtype)

    return kernel


def upsample_layer_forward(x_nct, v, g, bias, alpha, stride, kernel_size, *,
                           tq_target=None, mxu_dtype=jnp.bfloat16,
                           vmem_budget_bytes=20 * 1024 * 1024):
    """UpsampleLayer.forward (repeat=False, causal=False, PReLU, weight_norm).

    x_nct: (B, C_in, T)                  -- PyTorch NCT layout, any float dtype
    v    : (C_in, C_out, K)              -- weight_norm direction (ConvTranspose1d weight)
    g    : (C_in, 1, 1)                  -- weight_norm magnitude (dim=0)
    bias : (C_out,)
    alpha: scalar                        -- PReLU parameter
    tq_target: per-step input columns (None = auto from VMEM budget)
    mxu_dtype: dtype of the MXU operands (bf16 recommended on v6e/v7x)
    returns (B, C_out, T_out), T_out = (T-1)*stride - 2*pad + K
    """
    B, C_in, T = x_nct.shape
    Cin2, C_out, K = v.shape
    assert Cin2 == C_in and K == kernel_size
    s = int(stride)
    # TODO(synk): odd (kernel_size - stride), repeat=True, causal=True not implemented.
    assert K >= s and (K - s) % 2 == 0, "requires kernel_size >= stride and even (K - stride)"
    p = (K - s) // 2
    Kp = _cdiv(K, s)
    dmin = p // s
    dmax = (p + s - 1) // s
    HL = (Kp - 1) - dmin          # left halo columns
    HR = dmax                     # right halo columns
    H = HL + HR
    E = H + 1                     # distinct input shifts across all phases (<= Kp+1)
    HP = max(H, 1)
    T_out = (T - 1) * s - 2 * p + K                  # == s*T for even (K - s)

    x_dtype = x_nct.dtype
    xb = np.dtype(x_dtype).itemsize
    mb = np.dtype(mxu_dtype).itemsize

    # ---- time tiling: TQ input columns per grid step (output tile = s*TQ) ----
    if T < 128:
        TQ = T                                       # lane rule: block == full dim
    else:
        if tq_target is None:
            per_col = (2 * C_in * xb                 # x block (double-buffered)
                       + 2 * s * C_out * xb          # out block (double-buffered)
                       + C_in * xb                   # window scratch
                       + E * C_in * mb               # im2col operand
                       + 2 * s * C_out * 4)          # f32 accumulator / epilogue
            tgt = max(128, int(vmem_budget_bytes // max(per_col, 1)) // 128 * 128)
        else:
            tgt = max(128, (int(tq_target) // 128) * 128)
        TQ = int(min(tgt, 2048, _round_up(T, 128)))  # lane rule: multiple of 128
    NT = _cdiv(T, TQ)
    # v7x megacore balance: ensure the (B, NT) grid has >= 2 steps when possible.
    if B * NT < 2 and TQ >= 256:
        TQ = int(max(128, _round_up(_cdiv(TQ, 2), 128)))
        NT = _cdiv(T, TQ)
    QT = NT * TQ
    need_tail_mask = (T % TQ) != 0

    # ---- weight norm (PyTorch weight_norm dim=0 on (C_in, C_out, K)) ----
    norm = jnp.sqrt(jnp.sum(v * v, axis=(1, 2), keepdims=True))
    w = (g * v / norm).astype(jnp.float32)                       # (C_in, C_out, K)

    # ---- fold all phases and taps into one (s*C_out, E*C_in) matrix ----
    # wf[i0*C_out + co, e*C_in + ci] = w[ci, co, k] for the unique tap k of
    # phase i0 hitting input shift e (zero where no tap exists).
    k_idx = np.full((s, E), K, np.int32)            # K == "zero tap" sentinel
    for i0 in range(s):
        r = (i0 + p) % s
        base = (i0 + p) // s
        for j in range(Kp):
            k = r + j * s
            if k >= K:
                continue
            e = base - j + HL
            k_idx[i0, e] = k
    w_ext = jnp.concatenate([w, jnp.zeros((C_in, C_out, 1), jnp.float32)], axis=2)
    wf = jnp.transpose(w_ext[:, :, k_idx], (2, 1, 3, 0))         # (s, C_out, E, C_in)
    wf = wf.reshape(s * C_out, E * C_in).astype(mxu_dtype)

    bias_all = jnp.tile(bias.astype(jnp.float32), s).reshape(s * C_out, 1)
    alpha1d = jnp.asarray(alpha, jnp.float32).reshape(1)

    # ---- tiny halo side array (B, NT, C_in, HP); OOB columns pre-zeroed ----
    t_arr = np.arange(NT)[:, None]
    if H > 0:
        cols = np.concatenate([t_arr * TQ - HL + np.arange(HL)[None, :],
                               (t_arr + 1) * TQ + np.arange(HR)[None, :]], axis=1)
    else:
        cols = np.zeros((NT, 1), np.int64)
    valid = jnp.asarray((cols >= 0) & (cols < T), dtype=x_dtype)
    halo = x_nct[:, :, np.clip(cols, 0, T - 1)] * valid[None, None]
    halo = jnp.transpose(halo, (0, 2, 1, 3))                     # (B, NT, C_in, HP)

    Wpad = max(128, _round_up(TQ + H, 128))                      # lane-padded scratch

    kernel = _make_upsample_kernel(E=E, HL=HL, HR=HR, TQ=TQ, T=T, C_in=C_in,
                                   C_out=C_out, s=s, mxu_dtype=mxu_dtype,
                                   need_tail_mask=need_tail_mask)

    vmem_est = (2 * C_in * TQ * xb + 2 * s * C_out * TQ * xb
                + 2 * C_in * HP * xb + C_in * Wpad * xb
                + s * C_out * E * C_in * mb + s * C_out * 4
                + 2 * (E * C_in * TQ * mb + s * C_out * TQ * 4))
    vmem_limit = int(min(max(32 * 1024 * 1024, 2 * vmem_est), 48 * 1024 * 1024))

    out = pl.pallas_call(
        kernel,
        out_shape=jax.ShapeDtypeStruct((B, s * C_out, QT), x_dtype),
        grid=(B, NT),
        in_specs=[
            pl.BlockSpec((None, C_in, TQ), lambda b, t: (b, 0, t)),           # x (NCT, native)
            pl.BlockSpec((None, None, C_in, HP), lambda b, t: (b, t, 0, 0)),  # halo
            pl.BlockSpec((s * C_out, E * C_in), lambda b, t: (0, 0)),         # folded weights
            pl.BlockSpec((s * C_out, 1), lambda b, t: (0, 0)),                # bias
            pl.BlockSpec(memory_space=pltpu.MemorySpace.SMEM),                # PReLU alpha
        ],
        out_specs=pl.BlockSpec((None, s * C_out, TQ), lambda b, t: (b, 0, t)),
        scratch_shapes=[pltpu.VMEM((C_in, Wpad), x_dtype)],
        compiler_params=pltpu.CompilerParams(
            dimension_semantics=("parallel", "parallel"),
            vmem_limit_bytes=vmem_limit),
    )(x_nct, halo, wf, bias_all, alpha1d)

    # Depth-to-space: y[b, co, q*s + i0] = out[b, i0*C_out + co, q]
    # TODO(synk): fusing this interleave into the kernel store needs strided
    # lane stores (or s==2 bf16 u32 packing); prefer fusing into the consumer.
    y = out.reshape(B, s, C_out, QT)
    y = jnp.transpose(y, (0, 2, 3, 1)).reshape(B, C_out, QT * s)
    return y[:, :, :T_out]


def reference_forward(x_nct, v, g, bias, alpha, stride, kernel_size,
                      contraction_dtype=None):
    """Independent pure-JAX reference (scatter-add ConvTranspose1d + PReLU)."""
    B, C_in, T = x_nct.shape
    _, C_out, K = v.shape
    pad = (kernel_size - stride) // 2
    norm = jnp.sqrt(jnp.sum(v * v, axis=(1, 2), keepdims=True))
    w = (g * v / norm).astype(jnp.float32)
    xr = x_nct.astype(jnp.float32)
    if contraction_dtype is not None:
        # Mirror the kernel's MXU-operand rounding (bf16 inputs, f32 accumulate).
        w = w.astype(contraction_dtype).astype(jnp.float32)
        xr = xr.astype(contraction_dtype).astype(jnp.float32)
    contrib = jnp.einsum('bct,cok->botk', xr, w)                 # (B, C_out, T, K)
    L = (T - 1) * stride + K
    idx = (jnp.arange(T)[:, None] * stride + jnp.arange(K)[None, :]).reshape(-1)
    y_full = jnp.zeros((B, C_out, L), jnp.float32).at[:, :, idx].add(
        contrib.reshape(B, C_out, -1))
    y = y_full[:, :, pad:L - pad] if pad > 0 else y_full
    y = y + bias[None, :, None].astype(jnp.float32)
    a = jnp.asarray(alpha, jnp.float32)
    return jnp.where(y > 0, y, a * y)


if __name__ == "__main__":
    key = jax.random.PRNGKey(0)

    configs = [
        # (B, C_in, C_out, T, stride, K, tq_target)
        (2, 8, 16, 300, 2, 4, 128),   # multi time-tile, cross-tile halo, tail mask
        (2, 16, 8, 130, 4, 6, 128),   # stride 4, zero-padded taps, partial tiles
        (1, 8, 16, 16, 2, 4, None),   # tiny T (< 128), single-tile path
        (1, 8, 16, 256, 2, 2, None),  # K == stride (no halo), megacore split path
        (2, 8, 16, 640, 2, 4, None),  # auto TQ, exact multiple (no tail mask)
    ]
    for (B, C_in, C_out, T, stride, K, tqt) in configs:
        key, k_x, k_v, k_g, k_b = jax.random.split(key, 5)
        x = jax.random.normal(k_x, (B, C_in, T), jnp.float32)
        v = 0.1 * jax.random.normal(k_v, (C_in, C_out, K), jnp.float32)
        g = jax.random.uniform(k_g, (C_in, 1, 1), jnp.float32, 0.5, 1.5)
        bias = 0.05 * jax.random.normal(k_b, (C_out,), jnp.float32)
        alpha = jnp.float32(0.25)                      # nn.PReLU() default init

        out = jax.block_until_ready(
            upsample_layer_forward(x, v, g, bias, alpha, stride, K,
                                   tq_target=tqt, mxu_dtype=jnp.bfloat16))
        ref = jax.block_until_ready(
            reference_forward(x, v, g, bias, alpha, stride, K,
                              contraction_dtype=jnp.bfloat16))

        T_out = (T - 1) * stride - 2 * ((K - stride) // 2) + K
        assert out.shape == (B, C_out, T_out), (out.shape, (B, C_out, T_out))
        np.testing.assert_allclose(np.asarray(out), np.asarray(ref),
                                   rtol=1e-3, atol=1e-3)

    print("KERNEL_OK")
</pallas_src>

<mosaic_0001>
module attributes {stable_mosaic.version = 11 : i64} {
  func.func @kernel(%arg0: i32, %arg1: i32, %arg2: memref<1x8x128xf32, #tpu.memory_space<vmem>>, %arg3: memref<1x1x8x2xf32, #tpu.memory_space<vmem>>, %arg4: memref<32x24xbf16, #tpu.memory_space<vmem>>, %arg5: memref<32x1xf32, #tpu.memory_space<vmem>>, %arg6: memref<1xf32, #tpu.memory_space<smem>>, %arg7: memref<1x32x128xf32, #tpu.memory_space<vmem>>, %arg8: memref<8x256xf32, #tpu.memory_space<vmem>>) attributes {dimension_semantics = [#tpu.dimension_semantics<parallel>, #tpu.dimension_semantics<parallel>], iteration_bounds = array<i64: 2, 3>, scalar_prefetch = 0 : i64, scratch_operands = 1 : i64, tpu.core_type = #tpu.core_type<tc>, window_params = [{transform_indices = @transform_0, window_bounds = array<i64: 1, 8, 128>}, {transform_indices = @transform_1, window_bounds = array<i64: 1, 1, 8, 2>}, {pipeline_mode = #tpu.pipeline_mode<synchronous>, transform_indices = @transform_2, window_bounds = array<i64: 32, 24>}, {pipeline_mode = #tpu.pipeline_mode<synchronous>, transform_indices = @transform_3, window_bounds = array<i64: 32, 1>}, {transform_indices = @transform_4, window_bounds = array<i64: 1>}, {transform_indices = @transform_5, window_bounds = array<i64: 1, 32, 128>}]} {
    %c0 = arith.constant 0 : index
    %c0_0 = arith.constant 0 : index
    %c0_1 = arith.constant 0 : index
    %0 = vector.load %arg2[%c0, %c0_0, %c0_1] : memref<1x8x128xf32, #tpu.memory_space<vmem>>, vector<1x8x128xf32>
    %1 = vector.shape_cast %0 : vector<1x8x128xf32> to vector<8x128xf32>
    %2 = tpu.iota {dimensions = array<i32: 1>} : vector<8x128xi32>
    %c128_i32 = arith.constant 128 : i32
    %3 = arith.muli %arg1, %c128_i32 : i32
    %4 = vector.broadcast %3 : i32 to vector<8x128xi32>
    %5 = arith.addi %2, %4 : vector<8x128xi32>
    %c300_i32 = arith.constant 300 : i32
    %6 = vector.broadcast %c300_i32 : i32 to vector<8x128xi32>
    %7 = arith.cmpi slt, %5, %6 : vector<8x128xi32>
    %cst = arith.constant 0.000000e+00 : f32
    %8 = vector.broadcast %cst : f32 to vector<8x128xf32>
    %9 = arith.select %7, %1, %8 : vector<8x128xi1>, vector<8x128xf32>
    %c0_2 = arith.constant 0 : index
    %c0_3 = arith.constant 0 : index
    %c0_4 = arith.constant 0 : index
    %c0_5 = arith.constant 0 : index
    %10 = vector.load %arg3[%c0_2, %c0_3, %c0_4, %c0_5] : memref<1x1x8x2xf32, #tpu.memory_space<vmem>>, vector<1x1x8x1xf32>
    %11 = vector.shape_cast %10 : vector<1x1x8x1xf32> to vector<8x1xf32>
    %c0_6 = arith.constant 0 : index
    %c0_7 = arith.constant 0 : index
    %12 = vector.load %arg8[%c0_6, %c0_7] : memref<8x256xf32, #tpu.memory_space<vmem>>, vector<8x1xf32>
    tpu.vector_store %arg8[%c0_6, %c0_7], %11 {strides = array<i32>} : memref<8x256xf32, #tpu.memory_space<vmem>>, vector<8x1xf32>,
    %c0_8 = arith.constant 0 : index
    %c1 = arith.constant 1 : index
    %13 = vector.load %arg8[%c0_8, %c1] : memref<8x256xf32, #tpu.memory_space<vmem>>, vector<8x128xf32>
    tpu.vector_store %arg8[%c0_8, %c1], %9 {strides = array<i32>} : memref<8x256xf32, #tpu.memory_space<vmem>>, vector<8x128xf32>,
    %c0_9 = arith.constant 0 : index
    %c0_10 = arith.constant 0 : index
    %c0_11 = arith.constant 0 : index
    %c1_12 = arith.constant 1 : index
    %14 = vector.load %arg3[%c0_9, %c0_10, %c0_11, %c1_12] : memref<1x1x8x2xf32, #tpu.memory_space<vmem>>, vector<1x1x8x1xf32>
    %15 = vector.shape_cast %14 : vector<1x1x8x1xf32> to vector<8x1xf32>
    %c0_13 = arith.constant 0 : index
    %c129 = arith.constant 129 : index
    %16 = vector.load %arg8[%c0_13, %c129] : memref<8x256xf32, #tpu.memory_space<vmem>>, vector<8x1xf32>
    tpu.vector_store %arg8[%c0_13, %c129], %15 {strides = array<i32>} : memref<8x256xf32, #tpu.memory_space<vmem>>, vector<8x1xf32>,
    %c0_14 = arith.constant 0 : index
    %c0_15 = arith.constant 0 : index
    %17 = vector.load %arg8[%c0_14, %c0_15] : memref<8x256xf32, #tpu.memory_space<vmem>>, vector<8x128xf32>
    %c0_16 = arith.constant 0 : index
    %c1_17 = arith.constant 1 : index
    %18 = vector.load %arg8[%c0_16, %c1_17] : memref<8x256xf32, #tpu.memory_space<vmem>>, vector<8x128xf32>
    %c0_18 = arith.constant 0 : index
    %c2 = arith.constant 2 : index
    %19 = vector.load %arg8[%c0_18, %c2] : memref<8x256xf32, #tpu.memory_space<vmem>>, vector<8x128xf32>
    %20 = tpu.concatenate %17, %18, %19 in 0 : vector<8x128xf32>, vector<8x128xf32>, vector<8x128xf32> -> vector<24x128xf32>
    %c0_19 = arith.constant 0 : index
    %c0_20 = arith.constant 0 : index
    %21 = vector.load %arg4[%c0_19, %c0_20] : memref<32x24xbf16, #tpu.memory_space<vmem>>, vector<32x24xbf16>
    %22 = arith.truncf %20 : vector<24x128xf32> to vector<24x128xbf16>
    %cst_21 = arith.constant dense<0.000000e+00> : vector<32x128xf32>
    %23 = tpu.matmul %21, %22, %cst_21 {dimension_numbers = #tpu.dot_dimension_numbers<[1], [0], [0], [1], [0, 0, 1, 1], [], []>} : vector<32x24xbf16>, vector<24x128xbf16>, vector<32x128xf32> -> vector<32x128xf32>
    %c0_22 = arith.constant 0 : index
    %c0_23 = arith.constant 0 : index
    %24 = vector.load %arg5[%c0_22, %c0_23] : memref<32x1xf32, #tpu.memory_space<vmem>>, vector<32x1xf32>
    %25 = vector.broadcast %24 : vector<32x1xf32> to vector<32x128xf32>
    %26 = arith.addf %23, %25 : vector<32x128xf32>
    %c0_24 = arith.constant 0 : index
    %27 = memref.load %arg6[%c0_24] : memref<1xf32, #tpu.memory_space<smem>>
    %cst_25 = arith.constant 0.000000e+00 : f32
    %28 = vector.broadcast %cst_25 : f32 to vector<32x128xf32>
    %29 = arith.cmpf ogt, %26, %28 : vector<32x128xf32>
    %30 = vector.broadcast %27 : f32 to vector<32x128xf32>
    %31 = arith.mulf %30, %26 : vector<32x128xf32>
    %32 = arith.select %29, %26, %31 : vector<32x128xi1>, vector<32x128xf32>
    %c0_26 = arith.constant 0 : index
    %c0_27 = arith.constant 0 : index
    %c0_28 = arith.constant 0 : index
    %33 = vector.load %arg7[%c0_26, %c0_27, %c0_28] : memref<1x32x128xf32, #tpu.memory_space<vmem>>, vector<1x32x128xf32>
    %34 = vector.shape_cast %33 : vector<1x32x128xf32> to vector<32x128xf32>
    %35 = vector.shape_cast %32 : vector<32x128xf32> to vector<1x32x128xf32>
    tpu.vector_store %arg7[%c0_26, %c0_27, %c0_28], %35 {strides = array<i32>} : memref<1x32x128xf32, #tpu.memory_space<vmem>>, vector<1x32x128xf32>,
    return
  }
  func.func @transform_0(%arg0: i32, %arg1: i32) -> (i32, i32, i32) {
    %c0_i32 = arith.constant 0 : i32
    %c0_i32_0 = arith.constant 0 : i32
    return %arg0, %c0_i32, %arg1 : i32, i32, i32
  }
  func.func @transform_1(%arg0: i32, %arg1: i32) -> (i32, i32, i32, i32) {
    %c0_i32 = arith.constant 0 : i32
    %c0_i32_0 = arith.constant 0 : i32
    %c0_i32_1 = arith.constant 0 : i32
    return %arg0, %arg1, %c0_i32, %c0_i32_0 : i32, i32, i32, i32
  }
  func.func @transform_2(%arg0: i32, %arg1: i32) -> (i32, i32) {
    %c0_i32 = arith.constant 0 : i32
    %c0_i32_0 = arith.constant 0 : i32
    %c0_i32_1 = arith.constant 0 : i32
    return %c0_i32, %c0_i32_0 : i32, i32
  }
  func.func @transform_3(%arg0: i32, %arg1: i32) -> (i32, i32) {
    %c0_i32 = arith.constant 0 : i32
    %c0_i32_0 = arith.constant 0 : i32
    %c0_i32_1 = arith.constant 0 : i32
    return %c0_i32, %c0_i32_0 : i32, i32
  }
  func.func @transform_4(%arg0: i32, %arg1: i32) -> i32 {
    %c0_i32 = arith.constant 0 : i32
    %c0_i32_0 = arith.constant 0 : i32
    return %c0_i32 : i32
  }
  func.func @transform_5(%arg0: i32, %arg1: i32) -> (i32, i32, i32) {
    %c0_i32 = arith.constant 0 : i32
    %c0_i32_0 = arith.constant 0 : i32
    return %arg0, %c0_i32, %arg1 : i32, i32, i32
  }
}

</mosaic_0001>

<llo_original>
// kernel: tpu_custom_call.1
$region0: #{tpu_custom_call.1}
  #allocation0 [shape = 'u32[]', space=smem, size = 0x4, offset = 0x4, fixed_abs, tag = 'smem constant byte address 0x4 - core index']
  #allocation1 [shape = 'u32[144,128]{1,0:T(1,128)}', space=vmem, size = 0x12000, scoped, tag = 'internal scratch']
  #allocation2 [shape = 'f32[8,256]{1,0:T(8,128)}', space=vmem, size = 0x2000, scoped, tag = 'scratch operand']
  #allocation3 [shape = 'f32[1]{0:T(128)S(6)}', space=smem, size = 0x200, scoped, tag = 'scoped memory for tpu_custom_call.1']
  %s0 = inlined_call_operand.vmem [shape: f32[2,8,300], index: 0, kind: input, shape index: {}]
  %s1 = inlined_call_operand.vmem [shape: f32[2,3,8,2], index: 1, kind: input, shape index: {}]
  %s2 = inlined_call_operand.vmem [shape: bf16[32,24], index: 2, kind: input, shape index: {}]
  %s3 = inlined_call_operand.vmem [shape: f32[32,1], index: 3, kind: input, shape index: {}]
  %s4 = inlined_call_operand.<no memory space> [shape: f32[1], index: 4, kind: input, shape index: {}]
  %s5 = inlined_call_operand.hbm [shape: f32[2,32,384], index: 5, kind: output, shape index: {}]
  %s6 = sld [smem:[#allocation0]]
  $region53: #{tpu_custom_call.1} parent=0
    _
  %s8 = ssub.s32 1, %s6
  %s9 = scalar_select 0, %s8, %s6
  %10 = sst [smem:[#allocation3]] %s4
  $region1: #{tpu_custom_call.1} parent=0
    #allocation4 [shape = 'u8[32768]{0}', space=vmem, size = 0x8000, scoped, tag = 'output window, operand 0']
    #allocation5 [shape = 's32[2]{0}', space=sflag, size = 0x8, scoped, tag = 'scoped memory for tpu_custom_call.1']
    %11 = vsyncpa [#allocation5], 0
    %s12 = scalar_lea.sflag [#allocation5], 1
    %13 = vsyncpa %s12, 0
    loop: start=0, step=1, limit=8
    $region2: #{tpu_custom_call.1} parent=1 // loop_pre_header
      _
    $region3: #{tpu_custom_call.1} parent=1 // loop_header
      %s15 = sphi 0, %s19
      %p16 = scmp.ge.s32.totalorder %s15, 8
      %s22 = sphi 0, %s34
      %s23 = sphi 0, %s30
      %s24 = sphi 0, %s22
      %s25 = sphi 0, %s23
      %s26 = sphi 0, %s24
      %s27 = sphi 0, %s25
      %s39 = sphi 0, %s41
      %s42 = sphi 0, %s39
      %s43 = sphi 0, %s42
      %s59 = sphi 0, %s43
      %s67 = sphi 0, %s69
      %s70 = sphi 0, %s67
      %s71 = sphi 0, %s70
      %s87 = sphi 0, %s71
      %s91 = sphi 0, %s91
      %s93 = sphi 0, %s91
      %s94 = sphi 0, %s93
      %s108 = sphi 0, %s94
      %s112 = sphi 0, %s112
      %s114 = sphi 0, %s112
      %s115 = sphi 0, %s114
      %s129 = sphi 0, %s115
      %s133 = sphi 0, %s133
      %s135 = sphi 0, %s133
      %s136 = sphi 0, %s135
      %s150 = sphi 0, %s136
      %s158 = sphi 0, %s160
      %s161 = sphi 0, %s158
      %s162 = sphi 0, %s161
      %s178 = sphi 0, %s162
    $region4: #{tpu_custom_call.1} parent=1 // loop_header_branch
      %18 = sbr.rel (%p16) target = $region8
    $region5: #{tpu_custom_call.1} parent=1 // loop_body
      %s20 = ssub.s32 %s15, 1
      %s21 = ssub.s32 %s15, 2
      %s28 = sadd.s32 1, %s23
      %p29 = scmp.ge.s32.totalorder %s28, 3
      %s30 = scalar_select %p29, 0, %s28
      %s31 = sadd.s32 1, %s22
      %s32 = scalar_select %p29, %s31, %s22
      %p33 = scmp.ge.s32.totalorder %s32, 2
      %s34 = scalar_select %p33, 0, %s32
      %s35 = ssub.s32 %s22, %s34
      %s36 = ssub.s32 %s23, %s30
      %s37 = sor.u32 %s35, %s36
      %p38 = scmp.eq.s32.totalorder %s37, 0
      %s40 = sadd.s32 %s39, 1
      %s41 = scalar_select %p38, %s39, %s40
      %p44 = pneg %p38
      %p45 = scmp.eq.s32.totalorder %s15, 5
      %p46 = por %p44, %p45
      %p47 = scmp.ne.s32.totalorder %s39, %s42
      %p48 = scmp.eq.s32.totalorder %s15, 0
      %p49 = por %p47, %p48
      %p50 = scmp.ne.s32.totalorder %s39, %s42
      %p51 = scmp.eq.s32.totalorder %s20, 5
      %p52 = por %p50, %p51
      %p53 = scmp.ne.s32.totalorder %s42, %s43
      %p54 = scmp.eq.s32.totalorder %s20, 0
      %p55 = por %p53, %p54
      %p56 = scmp.ne.s32.totalorder %s42, %s43
      %p57 = scmp.eq.s32.totalorder %s21, 5
      %p58 = por %p56, %p57
      %p60 = scmp.ne.s32.totalorder %s43, %s59
      %p61 = scmp.eq.s32.totalorder %s21, 0
      %p62 = por %p60, %p61
      %s63 = ssub.s32 %s22, %s34
      %s64 = ssub.s32 %s23, %s30
      %s65 = sor.u32 %s63, %s64
      %p66 = scmp.eq.s32.totalorder %s65, 0
      %s68 = sadd.s32 %s67, 1
      %s69 = scalar_select %p66, %s67, %s68
      %p72 = pneg %p66
      %p73 = scmp.eq.s32.totalorder %s15, 5
      %p74 = por %p72, %p73
      %p75 = scmp.ne.s32.totalorder %s67, %s70
      %p76 = scmp.eq.s32.totalorder %s15, 0
      %p77 = por %p75, %p76
      %p78 = scmp.ne.s32.totalorder %s67, %s70
      %p79 = scmp.eq.s32.totalorder %s20, 5
      %p80 = por %p78, %p79
      %p81 = scmp.ne.s32.totalorder %s70, %s71
      %p82 = scmp.eq.s32.totalorder %s20, 0
      %p83 = por %p81, %p82
      %p84 = scmp.ne.s32.totalorder %s70, %s71
      %p85 = scmp.eq.s32.totalorder %s21, 5
      %p86 = por %p84, %p85
      %p88 = scmp.ne.s32.totalorder %s71, %s87
      %p89 = scmp.eq.s32.totalorder %s21, 0
      %p90 = por %p88, %p89
      %s92 = sadd.s32 %s91, 1
      %p95 = scmp.eq.s32.totalorder %s15, 5
      %p96 = scmp.ne.s32.totalorder %s91, %s93
      %p97 = scmp.eq.s32.totalorder %s15, 0
      %p98 = por %p96, %p97
      %p99 = scmp.ne.s32.totalorder %s91, %s93
      %p100 = scmp.eq.s32.totalorder %s20, 5
      %p101 = por %p99, %p100
      %p102 = scmp.ne.s32.totalorder %s93, %s94
      %p103 = scmp.eq.s32.totalorder %s20, 0
      %p104 = por %p102, %p103
      %p105 = scmp.ne.s32.totalorder %s93, %s94
      %p106 = scmp.eq.s32.totalorder %s21, 5
      %p107 = por %p105, %p106
      %p109 = scmp.ne.s32.totalorder %s94, %s108
      %p110 = scmp.eq.s32.totalorder %s21, 0
      %p111 = por %p109, %p110
      %s113 = sadd.s32 %s112, 1
      %p116 = scmp.eq.s32.totalorder %s15, 5
      %p117 = scmp.ne.s32.totalorder %s112, %s114
      %p118 = scmp.eq.s32.totalorder %s15, 0
      %p119 = por %p117, %p118
      %p120 = scmp.ne.s32.totalorder %s112, %s114
      %p121 = scmp.eq.s32.totalorder %s20, 5
      %p122 = por %p120, %p121
      %p123 = scmp.ne.s32.totalorder %s114, %s115
      %p124 = scmp.eq.s32.totalorder %s20, 0
      %p125 = por %p123, %p124
      %p126 = scmp.ne.s32.totalorder %s114, %s115
      %p127 = scmp.eq.s32.totalorder %s21, 5
      %p128 = por %p126, %p127
      %p130 = scmp.ne.s32.totalorder %s115, %s129
      %p131 = scmp.eq.s32.totalorder %s21, 0
      %p132 = por %p130, %p131
      %s134 = sadd.s32 %s133, 1
      %p137 = scmp.eq.s32.totalorder %s15, 5
      %p138 = scmp.ne.s32.totalorder %s133, %s135
      %p139 = scmp.eq.s32.totalorder %s15, 0
      %p140 = por %p138, %p139
      %p141 = scmp.ne.s32.totalorder %s133, %s135
      %p142 = scmp.eq.s32.totalorder %s20, 5
      %p143 = por %p141, %p142
      %p144 = scmp.ne.s32.totalorder %s135, %s136
      %p145 = scmp.eq.s32.totalorder %s20, 0
      %p146 = por %p144, %p145
      %p147 = scmp.ne.s32.totalorder %s135, %s136
      %p148 = scmp.eq.s32.totalorder %s21, 5
      %p149 = por %p147, %p148
      %p151 = scmp.ne.s32.totalorder %s136, %s150
      %p152 = scmp.eq.s32.totalorder %s21, 0
      %p153 = por %p151, %p152
      %s154 = ssub.s32 %s22, %s34
      %s155 = ssub.s32 %s23, %s30
      %s156 = sor.u32 %s154, %s155
      %p157 = scmp.eq.s32.totalorder %s156, 0
      %s159 = sadd.s32 %s158, 1
      %s160 = scalar_select %p157, %s158, %s159
      %p163 = pneg %p157
      %p164 = scmp.eq.s32.totalorder %s15, 5
      %p165 = por %p163, %p164
      %p166 = scmp.ne.s32.totalorder %s158, %s161
      %p167 = scmp.eq.s32.totalorder %s15, 0
      %p168 = por %p166, %p167
      %p169 = scmp.ne.s32.totalorder %s158, %s161
      %p170 = scmp.eq.s32.totalorder %s20, 5
      %p171 = por %p169, %p170
      %p172 = scmp.ne.s32.totalorder %s161, %s162
      %p173 = scmp.eq.s32.totalorder %s20, 0
      %p174 = por %p172, %p173
      %p175 = scmp.ne.s32.totalorder %s161, %s162
      %p176 = scmp.eq.s32.totalorder %s21, 5
      %p177 = por %p175, %p176
      %p179 = scmp.ne.s32.totalorder %s162, %s178
      %p180 = scmp.eq.s32.totalorder %s21, 0
      %p181 = por %p179, %p180
      %p182 = scmp.le.s32.totalorder 1, %s15
      %p183 = scmp.lt.s32.totalorder %s15, 7
      %p184 = pnand %p182, %p183
      %p185 = pneg %p184
      // Predicated region
      $region9: #{tpu_custom_call.1} parent=5 // pred_check
        _
      $region10: #{tpu_custom_call.1} parent=5 // pred_check_branch
        %187 = sbr.rel (%p184) target = $region12
      $region11: #{tpu_custom_call.1} parent=5 // pred_region
        %s188 = ssub.s32 %s15, 1
        // Predicated region
        $region13: #{tpu_custom_call.1} parent=11 // pred_check
          %p189 = pneg %p104
        $region14: #{tpu_custom_call.1} parent=11 // pred_check_branch
          %191 = sbr.rel (%p189) target = $region16
        $region15: #{tpu_custom_call.1} parent=11 // pred_region
          _
        $region16: #{tpu_custom_call.1} parent=11 // pred_fallthru
          _
        // Predicated region
        $region17: #{tpu_custom_call.1} parent=11 // pred_check
          %p192 = pneg %p125
        $region18: #{tpu_custom_call.1} parent=11 // pred_check_branch
          %194 = sbr.rel (%p192) target = $region20
        $region19: #{tpu_custom_call.1} parent=11 // pred_region
          _
        $region20: #{tpu_custom_call.1} parent=11 // pred_fallthru
          _
        // Predicated region
        $region21: #{tpu_custom_call.1} parent=11 // pred_check
          %p195 = pneg %p146
        $region22: #{tpu_custom_call.1} parent=11 // pred_check_branch
          %197 = sbr.rel (%p195) target = $region24
        $region23: #{tpu_custom_call.1} parent=11 // pred_region
          _
        $region24: #{tpu_custom_call.1} parent=11 // pred_fallthru
          _
      $region12: #{tpu_custom_call.1} parent=5 // pred_fallthru
        _
      %p198 = scmp.lt.s32.totalorder %s15, 6
      // Predicated region
      $region25: #{tpu_custom_call.1} parent=5 // pred_check
        %p199 = pneg %p198
      $region26: #{tpu_custom_call.1} parent=5 // pred_check_branch
        %201 = sbr.rel (%p199) target = $region28
      $region27: #{tpu_custom_call.1} parent=5 // pred_region
        // Predicated region
        $region29: #{tpu_custom_call.1} parent=27 // pred_check
          %p202 = pneg %p49
        $region30: #{tpu_custom_call.1} parent=27 // pred_check_branch
          %204 = sbr.rel (%p202) target = $region32
        $region31: #{tpu_custom_call.1} parent=27 // pred_region
          %p205 = scmp.lt.s32.totalorder %s22, 1
          %s206 = scalar_select %p205, %s22, 1
          %p207 = scmp.lt.s32.totalorder %s23, 2
          %s208 = scalar_select %p207, %s23, 2
          %s209 = smul.addr %s206, 3
          %s210 = sadd.s32 %s208, %s209
          %s211 = smul.addr %s210, 8
          %s212 = scalar_lea.vmem %s0, %s211
        $region32: #{tpu_custom_call.1} parent=27 // pred_fallthru
          _
        // Predicated region
        $region33: #{tpu_custom_call.1} parent=27 // pred_check
          %p213 = pneg %p77
        $region34: #{tpu_custom_call.1} parent=27 // pred_check_branch
          %215 = sbr.rel (%p213) target = $region36
        $region35: #{tpu_custom_call.1} parent=27 // pred_region
          %p216 = scmp.lt.s32.totalorder %s22, 1
          %s217 = scalar_select %p216, %s22, 1
          %p218 = scmp.lt.s32.totalorder %s23, 2
          %s219 = scalar_select %p218, %s23, 2
          %s220 = smul.addr %s217, 3
          %s221 = sadd.s32 %s219, %s220
          %s222 = smul.addr %s221, 8
          %s223 = scalar_lea.vmem %s1, %s222
        $region36: #{tpu_custom_call.1} parent=27 // pred_fallthru
          _
      $region28: #{tpu_custom_call.1} parent=5 // pred_fallthru
        _
      %p224 = scmp.le.s32.totalorder 1, %s15
      %p225 = scmp.lt.s32.totalorder %s15, 7
      %p226 = pnand %p224, %p225
      %p227 = pneg %p226
      // Predicated region
      $region37: #{tpu_custom_call.1} parent=5 // pred_check
        _
      $region38: #{tpu_custom_call.1} parent=5 // pred_check_branch
        %229 = sbr.rel (%p226) target = $region40
      $region39: #{tpu_custom_call.1} parent=5 // pred_region
        %s230 = ssub.s32 %s15, 1
        %p231 = scmp.lt.s32.totalorder %s24, 1
        %s232 = scalar_select %p231, %s24, 1
        %p233 = scmp.lt.s32.totalorder %s25, 2
        %s234 = scalar_select %p233, %s25, 2
        %s235 = smul.addr %s232, 3
        %s236 = sadd.s32 %s234, %s235
        %s237 = smul.addr %s236, 8
        %s238 = scalar_lea.vmem %s0, %s237
        %p239 = pneg %p55
        %p240 = pneg %p52
        %p241 = scmp.lt.s32.totalorder %s24, 1
        %s242 = scalar_select %p241, %s24, 1
        %p243 = scmp.lt.s32.totalorder %s25, 2
        %s244 = scalar_select %p243, %s25, 2
        %s245 = smul.addr %s242, 3
        %s246 = sadd.s32 %s244, %s245
        %s247 = smul.addr %s246, 8
        %s248 = scalar_lea.vmem %s1, %s247
        %p249 = pneg %p83
        %p250 = pneg %p80
        %p251 = pneg %p104
        %p252 = pneg %p101
        %p253 = pneg %p125
        %p254 = pneg %p122
        %p255 = pneg %p146
        %p256 = pneg %p143
        %p257 = pneg %p174
        %p258 = pneg %p171
        %s259 = sand.u32 %s161, 1
        %s260 = scalar_lea.sflag [#allocation5], %s259
        %s261 = sand.u32 %s161, 1
        %s262 = smul.addr %s261, 32
        %s263 = scalar_lea.vmem [#allocation4], %s262
        %p264 = scmp.lt.s32.totalorder %s24, 1
        %s265 = scalar_select %p264, %s24, 1
        %p266 = scmp.lt.s32.totalorder %s25, 2
        %s267 = scalar_select %p266, %s25, 2
        %s268 = smul.addr %s265, 3
        %s269 = sadd.s32 %s267, %s268
        %s270 = smul.addr %s269, 8
        %s271 = scalar_lea.vmem %s0, %s270
        %p272 = scmp.lt.s32.totalorder %s24, 1
        %s273 = scalar_select %p272, %s24, 1
        %p274 = scmp.lt.s32.totalorder %s25, 2
        %s275 = scalar_select %p274, %s25, 2
        %s276 = smul.addr %s273, 3
        %s277 = sadd.s32 %s275, %s276
        %s278 = smul.addr %s277, 8
        %s279 = scalar_lea.vmem %s1, %s278
        %v281 = vld [vmem:[%s271] sm:$0xff]
        %v282 = vlaneseq
        %v283 = vand.u32 %v282, 127
        %s284 = smul.u32 %s25, 128
        %v285 = vstv %s284
        %v286 = vadd.s32 %v283, %v285
        %vm287 = vcmp.lt.s32.totalorder %v286, 300
        %v288 = vsel %vm287, %v281, 0.0
        %v289 = vld [vmem:[%s279] sm:$0xff]
        %vm290 = vcmask 7168
        %291 = vst.msk [vmem:[#allocation2] sm:$0xff] %vm290, %v289
        %293 = vrot.lane.b32.xlu0 %v288, 1
        %v294 = vpop.permute.xlu0 %293
        %vm296 = vcmask 1047560
        %297 = vst.msk [vmem:[#allocation2] sm:$0xff] %vm296, %v294
        %298 = vst.msk [vmem:[#allocation2 + $0x8] sm:$0xff] %vm290, %v294
        %v299 = vld [vmem:[%s279] sm:$0xff]
        %vm300 = vcmask 15368
        %301 = vst.msk [vmem:[#allocation2 + $0x8] sm:$0xff] %vm300, %v299
        %v302 = vld [vmem:[#allocation2] sm:$0xff]
        %v303 = vld [vmem:[#allocation2] sm:$0xff]
        %v304 = vld [vmem:[#allocation2 + $0x8] sm:$0xff]
        %307 = vrot.lane.b32.xlu0 %v303, 127
        %v308 = vpop.permute.xlu0 %307
        %309 = vrot.lane.b32.xlu0 %v304, 127
        %v310 = vpop.permute.xlu0 %309
        %vm311 = vcmask 1039360
        %v312 = vsel %vm311, %v308, %v310
        %314 = vrot.lane.b32.xlu0 %v303, 126
        %v315 = vpop.permute.xlu0 %314
        %316 = vrot.lane.b32.xlu0 %v304, 126
        %v317 = vpop.permute.xlu0 %316
        %vm318 = vcmask 1031168
        %v319 = vsel %vm318, %v315, %v317
        %v321 = vld [vmem:[%s2] sm:$0xf]
        %v322 = vld [vmem:[%s2 + $0x4] sm:$0xf]
        %v323 = vld [vmem:[%s2 + $0x8] sm:$0xf]
        %v324 = vld [vmem:[%s2 + $0xc] sm:$0xf]
        %v325 = vpack.c.bf16 %v312, %v302
        %v326 = vpack.c.bf16 %v319, %v319
        %v327 = vld [vmem:[%s3] sm:$0xff]
        %v328 = vld [vmem:[%s3 + $0x8] sm:$0xff]
        %v329 = vld [vmem:[%s3 + $0x10] sm:$0xff]
        %v330 = vld [vmem:[%s3 + $0x18] sm:$0xff]
        %332 = vset.pattern.permute.xlu0 0
        %333 = vperm.xlu0 %332, %v327
        %v334 = vpop.permute.xlu0 %333
        %337 = vset.pattern.permute.xlu0 0
        %338 = vperm.xlu0 %337, %v328
        %v339 = vpop.permute.xlu0 %338
        %342 = vset.pattern.permute.xlu0 0
        %343 = vperm.xlu0 %342, %v329
        %v344 = vpop.permute.xlu0 %343
        %347 = vset.pattern.permute.xlu0 0
        %348 = vperm.xlu0 %347, %v330
        %v349 = vpop.permute.xlu0 %348
        %v355 = vunpack.c.l.b16 %v321
        %v356 = vunpack.c.l.b16 %v322
        %v357 = vunpack.c.l.b16 %v323
        %v358 = vunpack.c.l.b16 %v324
        %v359 = vpack.c.b16 %v356, %v355
        %v360 = vpack.c.b16 %v358, %v357
        %vm361 = vcmask 195584
        %v363 = vsel %vm361, %v359, 0
        %v366 = vsel %vm361, %v360, 0
        %vm368 = vcmask 1043456
        %v370 = vsel %vm368, %v326, 0
        %372 = vmatprep.subr.bf16.mxu0 0
        %373 = vmatpush1.bf16.msra.mxu0 0
        %374 = vmatprep.subr.bf16.mxu0 0
        %375 = vmatpush1.bf16.msra.mxu0 0
        %376 = vmatprep.subr.bf16.mxu0 0
        %377 = vmatpush1.bf16.msra.mxu0 0
        %378 = vmatprep.subr.bf16.mxu0 0
        %379 = vmatpush1.bf16.msra.mxu0 0
        %380 = vmatprep.subr.bf16.mxu0 0
        %381 = vmatpush1.bf16.msra.mxu0 0
        %382 = vmatprep.subr.bf16.mxu0 0
        %383 = vmatpush1.bf16.msra.mxu0 0
        %384 = vmatprep.subr.bf16.mxu0 0
        %385 = vmatpush1.bf16.msra.mxu0 %v370
        %386 = vmatprep.subr.bf16.mxu0 0
        %387 = vmatpush1.bf16.msra.mxu0 %v325
        %388 = vmatprep.subr.bf16.mxu0 0
        %389 = vmatpush2.bf16.msra.mxu0 0
        %390 = vmatprep.subr.bf16.mxu0 0
        %391 = vmatpush2.bf16.msra.mxu0 0
        %392 = vmatprep.subr.bf16.mxu0 0
        %393 = vmatpush2.bf16.msra.mxu0 0
        %394 = vmatprep.subr.bf16.mxu0 0
        %395 = vmatpush2.bf16.msra.mxu0 0
        %396 = vmatprep.subr.bf16.mxu0 0
        %397 = vmatpush2.bf16.msra.mxu0 0
        %398 = vmatprep.subr.bf16.mxu0 0
        %399 = vmatpush2.bf16.msra.mxu0 0
        %400 = vmatprep.subr.bf16.mxu0 0
        %401 = vmatpush2.bf16.msra.mxu0 0
        %402 = vmatprep.subr.bf16.mxu0 0
        %403 = vmatpush2.bf16.msra.mxu0 0
        %404 = vmatprep.mubr.bf16.mxu0 0
        %405 = vmatmul.mubr.bf16.gmra.mxu0 %v363
        %v406 = vpop.f32.mrf.mxu0
        %v407 = vadd.f32 %v334, %v406
        %v408 = vpop.f32.mrf.mxu0
        %v409 = vpop.f32.mrf.mxu0
        %v410 = vadd.f32 %v339, %v409
        %v411 = vpop.f32.mrf.mxu0
        %412 = vmatprep.mubr.bf16.mxu0 0
        %413 = vmatmul.mubr.bf16.gmra.mxu0 %v366
        %v414 = vpop.f32.mrf.mxu0
        %v415 = vadd.f32 %v344, %v414
        %v416 = vpop.f32.mrf.mxu0
        %v417 = vpop.f32.mrf.mxu0
        %v418 = vadd.f32 %v349, %v417
        %v419 = vpop.f32.mrf.mxu0
        %420 = vdwg.mxu0
        %s421 = sld [smem:[#allocation3]]
        %vm422 = vcmp.gt.f32.partialorder %v407, 0.0
        %vm423 = vcmp.gt.f32.partialorder %v410, 0.0
        %vm424 = vcmp.gt.f32.partialorder %v415, 0.0
        %vm425 = vcmp.gt.f32.partialorder %v418, 0.0
        %v426 = vstv %s421
        %v427 = vmul.f32 %v426, %v407
        %v428 = vmul.f32 %v426, %v410
        %v429 = vmul.f32 %v426, %v415
        %v430 = vmul.f32 %v426, %v418
        %v431 = vsel %vm422, %v407, %v427
        %v432 = vsel %vm423, %v410, %v428
        %v433 = vsel %vm424, %v415, %v429
        %v434 = vsel %vm425, %v418, %v430
        %435 = vst [vmem:[%s263] sm:$0xff] %v431
        %436 = vst [vmem:[%s263 + $0x8] sm:$0xff] %v432
        %437 = vst [vmem:[%s263 + $0x10] sm:$0xff] %v433
        %438 = vst [vmem:[%s263 + $0x18] sm:$0xff] %v434
        %s439 = sand.u32 %s161, 1
        %s440 = scalar_lea.sflag [#allocation5], %s439
        %s441 = sand.u32 %s161, 1
        %s442 = smul.addr %s441, 32
        %s443 = scalar_lea.vmem [#allocation4], %s442
        // Predicated region
        $region41: #{tpu_custom_call.1} parent=39 // pred_check
          %p444 = pneg %p171
        $region42: #{tpu_custom_call.1} parent=39 // pred_check_branch
          %446 = sbr.rel (%p444) target = $region44
        $region43: #{tpu_custom_call.1} parent=39 // pred_region
          %s448 = ssub.s32 512, 512
          %449 = vsyncadd %s440, %s448
          %s450 = smul.addr %s24, 12
          %s451 = sadd.s32 %s25, %s450
          %s452 = smul.addr %s451, 128
          %s453 = scalar_lea.hbm %s5, %s452
          %s454 = sshll.u32 %s443, 4
          %s455 = int_to_ptr.vmem [resolvable:$true] %s454
          %460 = dma.vmem_to_hbm [thread:$0]  %s455, 512, %s453, %s440, 128, 384, 8
        $region44: #{tpu_custom_call.1} parent=39 // pred_fallthru
          _
      $region40: #{tpu_custom_call.1} parent=5 // pred_fallthru
        _
      %p461 = scmp.le.s32.totalorder 2, %s15
      // Predicated region
      $region45: #{tpu_custom_call.1} parent=5 // pred_check
        %p462 = pneg %p461
      $region46: #{tpu_custom_call.1} parent=5 // pred_check_branch
        %464 = sbr.rel (%p462) target = $region48
      $region47: #{tpu_custom_call.1} parent=5 // pred_region
        %s465 = ssub.s32 %s15, 2
        // Predicated region
        $region49: #{tpu_custom_call.1} parent=47 // pred_check
          %p466 = pneg %p177
        $region50: #{tpu_custom_call.1} parent=47 // pred_check_branch
          %468 = sbr.rel (%p466) target = $region52
        $region51: #{tpu_custom_call.1} parent=47 // pred_region
          %s469 = sand.u32 %s162, 1
          %s470 = scalar_lea.sflag [#allocation5], %s469
          %s471 = sand.u32 %s162, 1
          %s472 = smul.addr %s471, 32
          %s473 = scalar_lea.vmem [#allocation4], %s472
          %474 = dma.done %s470, 512
        $region52: #{tpu_custom_call.1} parent=47 // pred_fallthru
          _
      $region48: #{tpu_custom_call.1} parent=5 // pred_fallthru
        _
    $region6: #{tpu_custom_call.1} parent=1 // loop_footer
      %s19 = sadd.s32 1, %s15
    $region7: #{tpu_custom_call.1} parent=1 // loop_footer_branch
      %14 = sbr.rel target = $region3
    $region8: #{tpu_custom_call.1} parent=1 // loop_exit
      _
    %475 = vsyncpa [#allocation5], 1
    %s476 = scalar_lea.sflag [#allocation5], 1
    %477 = vsyncpa %s476, 1

</llo_original>
